<compile_context>
chip_gen: v7x
topology: tpu7x:2x2x1
jax: 0.10.0
libtpu: 0.0.40
codegen_flags: <defaults>
</compile_context>

<pallas_src>
import jax
import jax.numpy as jnp
from jax.experimental import pallas as pl
from jax.experimental.pallas import tpu as pltpu


def _head_kernel(x_ref, w_ref, b_ref, o_ref):
    # x_ref: [tile_b, H]   CLS rows of this batch tile (compute dtype)
    # w_ref: [H, Lp]       out_proj weight, padded + pre-transposed (compute dtype)
    # b_ref: [1, Lp]       bias, padded (f32)
    # o_ref: [tile_b, Lp]  logits tile (f32, lane-dense)
    acc = jnp.dot(x_ref[...], w_ref[...], preferred_element_type=jnp.float32)
    o_ref[...] = (acc + b_ref[...]).astype(o_ref.dtype)


def roberta_classification_head(features, weight, bias, *,
                                max_tile_b=512,
                                vmem_budget_bytes=24 * 1024 * 1024):
    """features: [B, S, H]; weight: [L, H]; bias: [L] -> logits [B, L] (f32)."""
    B, S, H = features.shape
    L, Hw = weight.shape
    assert Hw == H, "weight must be [num_labels, hidden_size]"

    compute_dtype = features.dtype
    itemsize = jnp.dtype(compute_dtype).itemsize

    # Lane-dense output: pad labels to exactly the next multiple of 128.
    Lp = ((L + 127) // 128) * 128

    # One-time parameter prep (tiny, constant-foldable under jit): cast the
    # weight to the activation dtype, pad labels, transpose once to [H, Lp]
    # so the kernel sees a canonical [M,K]x[K,N] matmul.  Bias stays f32.
    w = weight.astype(compute_dtype)
    b = bias.astype(jnp.float32)
    if Lp != L:
        w = jnp.pad(w, ((0, Lp - L), (0, 0)))
        b = jnp.pad(b, (0, Lp - L))
    w_t = w.T                       # [H, Lp]
    b_row = b.reshape(1, Lp)

    # CLS extraction: fuse it into the kernel when the per-row DMA is
    # lane-legal (H % 128 == 0) and not descriptor/latency-bound (>= 1 KiB per
    # row); otherwise do the (tiny) slice in the wrapper.
    fuse_cls = (S > 1) and (H % 128 == 0) and (H * itemsize >= 1024)
    if fuse_cls:
        x_in = features.reshape(B, S * H)   # free view; CLS == columns [0:H)
    else:
        x_in = features[:, 0, :]            # contiguous [B, H] kernel input

    # Batch tiling.
    if B <= 64:
        tile_b = B                          # single grid step (v5e/v6e policy)
    else:
        # >= 2 tiles so the "parallel" grid axis shards over v7x's two TCs.
        tile_b = min(max_tile_b, ((-(-B // 2) + 7) // 8) * 8)

    # VMEM budget: double-buffered x + out tiles, (conservatively) double-
    # buffered resident weight + bias.
    def _vmem_bytes(tb):
        return (2 * tb * H * itemsize + 2 * tb * Lp * 4
                + 2 * Lp * H * itemsize + 2 * Lp * 4)

    while tile_b > 8 and _vmem_bytes(tile_b) > vmem_budget_bytes:
        tile_b -= 8

    grid = (pl.cdiv(B, tile_b),)

    out = pl.pallas_call(
        _head_kernel,
        out_shape=jax.ShapeDtypeStruct((B, Lp), jnp.float32),
        grid=grid,
        in_specs=[
            # x tile: (tile_b, H).  In the fused case, column block 0 of the
            # [B, S*H] view is exactly the CLS token of each row.
            pl.BlockSpec((tile_b, H), lambda i: (i, 0)),
            # Weight / bias: constant block -> resident across all grid steps.
            pl.BlockSpec((H, Lp), lambda i: (0, 0)),
            pl.BlockSpec((1, Lp), lambda i: (0, 0)),
        ],
        out_specs=pl.BlockSpec((tile_b, Lp), lambda i: (i, 0)),
        compiler_params=pltpu.CompilerParams(
            dimension_semantics=("parallel",),   # v7x: shard tiles over 2 TCs
            vmem_limit_bytes=32 * 1024 * 1024,   # safe on v5e/v6e/v7x
        ),
    )(x_in, w_t, b_row)

    # Drop label padding (kernel stores stayed lane-dense).
    return out[:, :L]


def _reference(features, weight, bias):
    return (jnp.dot(features[:, 0, :], weight.T,
                    precision=jax.lax.Precision.HIGHEST) + bias)


if __name__ == "__main__":
    key = jax.random.PRNGKey(0)
    k1, k2, k3, k4, k5, k6 = jax.random.split(key, 6)

    # --- Primary check: small config consistent with the module -------------
    B, S, H, L = 2, 8, 32, 4
    features = jax.random.normal(k1, (B, S, H), dtype=jnp.float32)
    weight = jax.random.normal(k2, (L, H), dtype=jnp.float32) * 0.02
    bias = jax.random.normal(k3, (L,), dtype=jnp.float32) * 0.02

    out = jax.block_until_ready(roberta_classification_head(features, weight, bias))
    ref = _reference(features, weight, bias)
    assert out.shape == (B, L)
    assert jnp.allclose(out, ref, atol=5e-3, rtol=5e-3), "primary check failed"

    # --- Secondary check: exercises the fused CLS path, a multi-step grid,
    #     and a ragged last batch tile (B not a multiple of tile_b). ---------
    B2, S2, H2, L2 = 68, 8, 256, 4
    feats2 = jax.random.normal(k4, (B2, S2, H2), dtype=jnp.float32)
    weight2 = jax.random.normal(k5, (L2, H2), dtype=jnp.float32) * 0.02
    bias2 = jax.random.normal(k6, (L2,), dtype=jnp.float32) * 0.02

    out2 = jax.block_until_ready(roberta_classification_head(feats2, weight2, bias2))
    ref2 = _reference(feats2, weight2, bias2)
    assert out2.shape == (B2, L2)
    assert jnp.allclose(out2, ref2, atol=5e-3, rtol=5e-3), "fused/ragged check failed"

    print("KERNEL_OK")
</pallas_src>

<mosaic_0001>
module attributes {stable_mosaic.version = 11 : i64} {
  func.func @_head_kernel(%arg0: i32, %arg1: memref<2x32xf32, #tpu.memory_space<vmem>>, %arg2: memref<32x128xf32, #tpu.memory_space<vmem>>, %arg3: memref<1x128xf32, #tpu.memory_space<vmem>>, %arg4: memref<2x128xf32, #tpu.memory_space<vmem>>) attributes {dimension_semantics = [#tpu.dimension_semantics<parallel>], iteration_bounds = array<i64: 1>, scalar_prefetch = 0 : i64, scratch_operands = 0 : i64, tpu.core_type = #tpu.core_type<tc>, window_params = [{transform_indices = @transform_0, window_bounds = array<i64: 2, 32>}, {pipeline_mode = #tpu.pipeline_mode<synchronous>, transform_indices = @transform_1, window_bounds = array<i64: 32, 128>}, {pipeline_mode = #tpu.pipeline_mode<synchronous>, transform_indices = @transform_2, window_bounds = array<i64: 1, 128>}, {transform_indices = @transform_3, window_bounds = array<i64: 2, 128>}]} {
    %c0 = arith.constant 0 : index
    %c0_0 = arith.constant 0 : index
    %0 = vector.load %arg1[%c0, %c0_0] : memref<2x32xf32, #tpu.memory_space<vmem>>, vector<2x32xf32>
    %c0_1 = arith.constant 0 : index
    %c0_2 = arith.constant 0 : index
    %1 = vector.load %arg2[%c0_1, %c0_2] : memref<32x128xf32, #tpu.memory_space<vmem>>, vector<32x128xf32>
    %cst = arith.constant dense<0.000000e+00> : vector<2x128xf32>
    %2 = tpu.matmul %0, %1, %cst {dimension_numbers = #tpu.dot_dimension_numbers<[1], [0], [0], [1], [0, 0, 1, 1], [], []>} : vector<2x32xf32>, vector<32x128xf32>, vector<2x128xf32> -> vector<2x128xf32>
    %c0_3 = arith.constant 0 : index
    %c0_4 = arith.constant 0 : index
    %3 = vector.load %arg3[%c0_3, %c0_4] : memref<1x128xf32, #tpu.memory_space<vmem>>, vector<1x128xf32>
    %4 = vector.broadcast %3 : vector<1x128xf32> to vector<2x128xf32>
    %5 = arith.addf %2, %4 : vector<2x128xf32>
    %c0_5 = arith.constant 0 : index
    %c0_6 = arith.constant 0 : index
    %6 = vector.load %arg4[%c0_5, %c0_6] : memref<2x128xf32, #tpu.memory_space<vmem>>, vector<2x128xf32>
    tpu.vector_store %arg4[%c0_5, %c0_6], %5 {strides = array<i32>} : memref<2x128xf32, #tpu.memory_space<vmem>>, vector<2x128xf32>,
    return
  }
  func.func @transform_0(%arg0: i32) -> (i32, i32) {
    %c0_i32 = arith.constant 0 : i32
    %c0_i32_0 = arith.constant 0 : i32
    return %arg0, %c0_i32 : i32, i32
  }
  func.func @transform_1(%arg0: i32) -> (i32, i32) {
    %c0_i32 = arith.constant 0 : i32
    %c0_i32_0 = arith.constant 0 : i32
    %c0_i32_1 = arith.constant 0 : i32
    return %c0_i32, %c0_i32_0 : i32, i32
  }
  func.func @transform_2(%arg0: i32) -> (i32, i32) {
    %c0_i32 = arith.constant 0 : i32
    %c0_i32_0 = arith.constant 0 : i32
    %c0_i32_1 = arith.constant 0 : i32
    return %c0_i32, %c0_i32_0 : i32, i32
  }
  func.func @transform_3(%arg0: i32) -> (i32, i32) {
    %c0_i32 = arith.constant 0 : i32
    %c0_i32_0 = arith.constant 0 : i32
    return %arg0, %c0_i32 : i32, i32
  }
}

</mosaic_0001>

<llo_original>
// kernel: tpu_custom_call.1
$region0: #{tpu_custom_call.1}
  #allocation0 [shape = 'u32[]', space=smem, size = 0x4, offset = 0x4, fixed_abs, tag = 'smem constant byte address 0x4 - core index']
  #allocation1 [shape = 'u32[144,128]{1,0:T(1,128)}', space=vmem, size = 0x12000, scoped, tag = 'internal scratch']
  %s0 = inlined_call_operand.hbm [shape: f32[2,32], index: 0, kind: input, shape index: {}]
  %s1 = inlined_call_operand.hbm [shape: f32[32,128], index: 1, kind: input, shape index: {}]
  %s2 = inlined_call_operand.vmem [shape: f32[1,128], index: 2, kind: input, shape index: {}]
  %s3 = inlined_call_operand.hbm [shape: f32[2,128], index: 3, kind: output, shape index: {}]
  %s4 = sld [smem:[#allocation0]]
  $region30: #{tpu_custom_call.1} parent=0
    _
  %s6 = ssub.s32 1, %s4
  %s7 = scalar_select 0, %s6, %s4
  $region1: #{tpu_custom_call.1} parent=0
    #allocation2 [shape = 'u8[1024]{0}', space=vmem, size = 0x400, scoped, tag = 'input window, operand 0, single buffered']
    #allocation3 [shape = 's32[1]{0}', space=sflag, size = 0x4, scoped, tag = 'scoped memory for tpu_custom_call.1']
    #allocation4 [shape = 's32[1]{0}', space=sflag, size = 0x4, scoped, tag = 'scoped memory for tpu_custom_call.1']
    #allocation5 [shape = 'u8[16384]{0}', space=vmem, size = 0x4000, scoped, tag = 'input window, operand 1, single buffered']
    #allocation6 [shape = 's32[1]{0}', space=sflag, size = 0x4, scoped, tag = 'scoped memory for tpu_custom_call.1']
    #allocation7 [shape = 'u8[1024]{0}', space=vmem, size = 0x400, scoped, tag = 'output window, operand 0, single buffered']
    %8 = vsyncpa [#allocation3], 0
    %9 = vsyncpa [#allocation6], 0
    %10 = vsyncpa [#allocation4], 0
    // Predicated region
    $region2: #{tpu_custom_call.1} parent=1 // pred_check
      _
    $region3: #{tpu_custom_call.1} parent=1 // pred_check_branch
      %12 = sbr.rel (0) target = $region5
    $region4: #{tpu_custom_call.1} parent=1 // pred_region
      %s14 = ssub.s32 32, 32
      %15 = vsyncadd [#allocation3], %s14
      %s17 = sshll.u32 [#allocation2], 4
      %s18 = int_to_ptr.vmem [resolvable:$true] %s17
      %20 = dma.hbm_to_vmem [thread:$0]  %s0, 32, %s18, [#allocation3]
    $region5: #{tpu_custom_call.1} parent=1 // pred_fallthru
      _
    // Predicated region
    $region6: #{tpu_custom_call.1} parent=1 // pred_check
      _
    $region7: #{tpu_custom_call.1} parent=1 // pred_check_branch
      %22 = sbr.rel (0) target = $region9
    $region8: #{tpu_custom_call.1} parent=1 // pred_region
      %s24 = ssub.s32 512, 512
      %25 = vsyncadd [#allocation6], %s24
      %s26 = sshll.u32 [#allocation5], 4
      %s27 = int_to_ptr.vmem [resolvable:$true] %s26
      %32 = dma.hbm_to_vmem [thread:$0]  %s1, 512, %s27, [#allocation6], 128, 128, 8
    $region9: #{tpu_custom_call.1} parent=1 // pred_fallthru
      _
    // Predicated region
    $region10: #{tpu_custom_call.1} parent=1 // pred_check
      _
    $region11: #{tpu_custom_call.1} parent=1 // pred_check_branch
      %34 = sbr.rel (0) target = $region13
    $region12: #{tpu_custom_call.1} parent=1 // pred_region
      _
    $region13: #{tpu_custom_call.1} parent=1 // pred_fallthru
      _
    // Predicated region
    $region14: #{tpu_custom_call.1} parent=1 // pred_check
      _
    $region15: #{tpu_custom_call.1} parent=1 // pred_check_branch
      %36 = sbr.rel (0) target = $region17
    $region16: #{tpu_custom_call.1} parent=1 // pred_region
      %37 = dma.done [#allocation3], 32
    $region17: #{tpu_custom_call.1} parent=1 // pred_fallthru
      _
    // Predicated region
    $region18: #{tpu_custom_call.1} parent=1 // pred_check
      _
    $region19: #{tpu_custom_call.1} parent=1 // pred_check_branch
      %39 = sbr.rel (0) target = $region21
    $region20: #{tpu_custom_call.1} parent=1 // pred_region
      %40 = dma.done [#allocation6], 512
    $region21: #{tpu_custom_call.1} parent=1 // pred_fallthru
      _
    %v41 = vld [vmem:[#allocation2] sm:$0x3]
    %v42 = vld [vmem:[#allocation5] sm:$0xff]
    %v43 = vld [vmem:[#allocation5 + $0x8] sm:$0xff]
    %v44 = vld [vmem:[#allocation5 + $0x10] sm:$0xff]
    %v45 = vld [vmem:[#allocation5 + $0x18] sm:$0xff]
    %v46 = vld [vmem:[%s2] sm:$0x1]
    %v48 = vlaneseq
    %v49 = vshrl.u32 %v48, 7
    %v50 = vsub.s32 0, %v49
    %v51 = vrot.slane %v46, %v50
    %vm53 = vcmask 261120
    %v55 = vsel %vm53, %v41, 0
    %57 = vmatprep.subr.mxu0 0.0
    %58 = vmatpush1.msra.mxu0 %v42
    %59 = vmatprep.subr.mxu0 0.0
    %60 = vmatpush1.msra.mxu0 %v43
    %61 = vmatprep.subr.mxu0 0.0
    %62 = vmatpush1.msra.mxu0 %v44
    %63 = vmatprep.subr.mxu0 0.0
    %64 = vmatpush1.msra.mxu0 %v45
    %65 = vmatprep.subr.mxu0 0.0
    %66 = vmatpush1.msra.mxu0 0.0
    %67 = vmatprep.subr.mxu0 0.0
    %68 = vmatpush1.msra.mxu0 0.0
    %69 = vmatprep.subr.mxu0 0.0
    %70 = vmatpush1.msra.mxu0 0.0
    %71 = vmatprep.subr.mxu0 0.0
    %72 = vmatpush1.msra.mxu0 0.0
    %73 = vmatprep.subr.mxu0 0.0
    %74 = vmatpush1.msra.mxu0 0.0
    %75 = vmatprep.subr.mxu0 0.0
    %76 = vmatpush1.msra.mxu0 0.0
    %77 = vmatprep.subr.mxu0 0.0
    %78 = vmatpush1.msra.mxu0 0.0
    %79 = vmatprep.subr.mxu0 0.0
    %80 = vmatpush1.msra.mxu0 0.0
    %81 = vmatprep.subr.mxu0 0.0
    %82 = vmatpush1.msra.mxu0 0.0
    %83 = vmatprep.subr.mxu0 0.0
    %84 = vmatpush1.msra.mxu0 0.0
    %85 = vmatprep.subr.mxu0 0.0
    %86 = vmatpush1.msra.mxu0 0.0
    %87 = vmatprep.subr.mxu0 0.0
    %88 = vmatpush1.msra.mxu0 0.0
    %89 = vmatprep.subr.mxu0 0.0
    %90 = vmatpush1.msra.mxu0 0.0
    %91 = vmatprep.subr.mxu0 0.0
    %92 = vmatpush1.msra.mxu0 0.0
    %93 = vmatprep.subr.mxu0 0.0
    %94 = vmatpush1.msra.mxu0 0.0
    %95 = vmatprep.subr.mxu0 0.0
    %96 = vmatpush1.msra.mxu0 0.0
    %97 = vmatprep.subr.mxu0 0.0
    %98 = vmatpush1.msra.mxu0 0.0
    %99 = vmatprep.subr.mxu0 0.0
    %100 = vmatpush1.msra.mxu0 0.0
    %101 = vmatprep.subr.mxu0 0.0
    %102 = vmatpush1.msra.mxu0 0.0
    %103 = vmatprep.subr.mxu0 0.0
    %104 = vmatpush1.msra.mxu0 0.0
    %105 = vmatprep.subr.mxu0 0.0
    %106 = vmatpush1.msra.mxu0 0.0
    %107 = vmatprep.subr.mxu0 0.0
    %108 = vmatpush1.msra.mxu0 0.0
    %109 = vmatprep.subr.mxu0 0.0
    %110 = vmatpush1.msra.mxu0 0.0
    %111 = vmatprep.subr.mxu0 0.0
    %112 = vmatpush1.msra.mxu0 0.0
    %113 = vmatprep.subr.mxu0 0.0
    %114 = vmatpush1.msra.mxu0 0.0
    %115 = vmatprep.subr.mxu0 0.0
    %116 = vmatpush1.msra.mxu0 0.0
    %117 = vmatprep.subr.mxu0 0.0
    %118 = vmatpush1.msra.mxu0 0.0
    %119 = vmatprep.subr.mxu0 0.0
    %120 = vmatpush1.msra.mxu0 0.0
    %121 = vmatprep.mubr.f32.mxu0 0.0
    %122 = vmatmul.mubr.f32.gmra.mrb[0].mxu0 %v55
    %v123 = vpop.f32.mrb[0].mxu0
    %v124 = vadd.f32 %v51, %v123
    %v125 = vpop.f32.mrb[0].mxu0
    %126 = vdwg.mxu0
    %127 = vst [vmem:[#allocation7] sm:$0x3] %v124
    // Predicated region
    $region22: #{tpu_custom_call.1} parent=1 // pred_check
      _
    $region23: #{tpu_custom_call.1} parent=1 // pred_check_branch
      %129 = sbr.rel (0) target = $region25
    $region24: #{tpu_custom_call.1} parent=1 // pred_region
      %s131 = ssub.s32 32, 32
      %132 = vsyncadd [#allocation4], %s131
      %s134 = sshll.u32 [#allocation7], 4
      %s135 = int_to_ptr.vmem [resolvable:$true] %s134
      %137 = dma.vmem_to_hbm [thread:$0]  %s135, 32, %s3, [#allocation4]
    $region25: #{tpu_custom_call.1} parent=1 // pred_fallthru
      _
    // Predicated region
    $region26: #{tpu_custom_call.1} parent=1 // pred_check
      _
    $region27: #{tpu_custom_call.1} parent=1 // pred_check_branch
      %139 = sbr.rel (0) target = $region29
    $region28: #{tpu_custom_call.1} parent=1 // pred_region
      %140 = dma.done [#allocation4], 32
    $region29: #{tpu_custom_call.1} parent=1 // pred_fallthru
      _
    %141 = vsyncpa [#allocation3], 1
    %142 = vsyncpa [#allocation6], 1
    %143 = vsyncpa [#allocation4], 1

</llo_original>
